<compile_context>
chip_gen: v7x
topology: tpu7x:2x2x1
jax: 0.10.0
libtpu: 0.0.40
codegen_flags: <defaults>
</compile_context>

<pallas_src>
import functools

import jax
import jax.numpy as jnp
from jax.experimental import pallas as pl
from jax.experimental.pallas import tpu as pltpu


_LANE = 128      # lane width: feature dims padded to multiples of this
_SUBLANE = 8     # sublane granule for the batch tile


def _round_up(x: int, m: int) -> int:
    return ((x + m - 1) // m) * m


def _make_autoencoder_kernel(n_enc_layers: int, n_dec_layers: int,
                             enc_dim_p: int, dec_dim_p: int):
    """Fused MLP autoencoder kernel for a fixed (static) layer count.

    Ref order: x_ref, (W, b) * (n_enc + n_dec), enc_out_ref, dec_out_ref, h_scratch
    """
    n_params = 2 * (n_enc_layers + n_dec_layers)

    def kernel(x_ref, *refs):
        param_refs = refs[:n_params]
        enc_out_ref = refs[n_params]
        dec_out_ref = refs[n_params + 1]
        h_scratch = refs[n_params + 2]          # f32 VMEM accumulator

        # x is already bf16 (cast once in the wrapper) — feeds the MXU directly.
        h = x_ref[...]

        idx = 0
        # ----- encoder: Linear + ReLU after every layer -----
        for _ in range(n_enc_layers):
            w = param_refs[idx][...]            # bf16 [in_p, out_p]
            b = param_refs[idx + 1][...]        # f32  [1, out_p]
            idx += 2
            out_dim = w.shape[1]
            acc = jnp.dot(h, w, preferred_element_type=jnp.float32) + b
            acc = jnp.maximum(acc, 0.0)
            h_scratch[:, :out_dim] = acc
            h = h_scratch[:, :out_dim].astype(jnp.bfloat16)

        # Last encoder layer's out_dim == enc_dim_p; store lane-dense f32 tile.
        enc_out_ref[...] = h_scratch[:, :enc_dim_p]

        # ----- decoder: Linear + ReLU except on the final Linear -----
        for layer in range(n_dec_layers):
            w = param_refs[idx][...]
            b = param_refs[idx + 1][...]
            idx += 2
            out_dim = w.shape[1]
            acc = jnp.dot(h, w, preferred_element_type=jnp.float32) + b
            if layer < n_dec_layers - 1:
                acc = jnp.maximum(acc, 0.0)
            h_scratch[:, :out_dim] = acc
            if layer < n_dec_layers - 1:
                h = h_scratch[:, :out_dim].astype(jnp.bfloat16)

        dec_out_ref[...] = h_scratch[:, :dec_dim_p]

    return kernel


@jax.jit
def autoencoder_forward(x, enc_flat, dec_flat):
    """x: [B, input_dim] f32. enc_flat/dec_flat: tuples (W0, b0, W1, b1, ...)
    with W stored as [in_features, out_features] and b as [out_features]."""
    n_enc = len(enc_flat) // 2
    n_dec = len(dec_flat) // 2
    B, in_dim = x.shape
    flat = list(enc_flat) + list(dec_flat)

    # ---- pad parameters to lane-dense (multiple-of-128) feature dims, bf16 W ----
    def pad_w(w):
        ip = _round_up(w.shape[0], _LANE)
        op = _round_up(w.shape[1], _LANE)
        return (jnp.zeros((ip, op), jnp.bfloat16)
                .at[: w.shape[0], : w.shape[1]].set(w.astype(jnp.bfloat16)))

    def pad_b(b):
        b2 = b.reshape(1, -1).astype(jnp.float32)
        op = _round_up(b2.shape[1], _LANE)
        return jnp.zeros((1, op), jnp.float32).at[:, : b2.shape[1]].set(b2)

    params_p = []
    for i in range(0, len(flat), 2):
        params_p.append(pad_w(flat[i]))
        params_p.append(pad_b(flat[i + 1]))

    enc_dim = enc_flat[-2].shape[1]
    dec_dim = dec_flat[-2].shape[1]
    in_dim_p = _round_up(in_dim, _LANE)
    enc_dim_p = _round_up(enc_dim, _LANE)
    dec_dim_p = _round_up(dec_dim, _LANE)
    max_dim_p = max(in_dim_p, enc_dim_p, dec_dim_p,
                    *[w.shape[1] for w in params_p[0::2]])

    # ---- batch tiling: up to 128 rows per grid step, B padded to a full tile ----
    tile_b = min(128, _round_up(B, _SUBLANE))
    b_p = _round_up(B, tile_b)
    x_p = (jnp.zeros((b_p, in_dim_p), jnp.bfloat16)
           .at[:B, :in_dim].set(x.astype(jnp.bfloat16)))

    kernel = _make_autoencoder_kernel(n_enc, n_dec, enc_dim_p, dec_dim_p)

    in_specs = [pl.BlockSpec((tile_b, in_dim_p), lambda i: (i, 0))]
    for p in params_p:
        # Full-block, constant index map: parameters stay resident in VMEM.
        in_specs.append(pl.BlockSpec(p.shape, lambda i: (0, 0)))

    enc_p, dec_p = pl.pallas_call(
        kernel,
        out_shape=(
            jax.ShapeDtypeStruct((b_p, enc_dim_p), jnp.float32),
            jax.ShapeDtypeStruct((b_p, dec_dim_p), jnp.float32),
        ),
        grid=(b_p // tile_b,),
        in_specs=in_specs,
        out_specs=(
            pl.BlockSpec((tile_b, enc_dim_p), lambda i: (i, 0)),
            pl.BlockSpec((tile_b, dec_dim_p), lambda i: (i, 0)),
        ),
        scratch_shapes=[pltpu.VMEM((tile_b, max_dim_p), jnp.float32)],
        compiler_params=pltpu.CompilerParams(
            dimension_semantics=("parallel",),
        ),
    )(x_p, *params_p)

    # Slice padding away.
    return enc_p[:B, :enc_dim], dec_p[:B, :dec_dim]


# ---------------------------------------------------------------------------
# Deterministic parameter construction (PyTorch nn.Linear-style uniform init)
# ---------------------------------------------------------------------------
def _init_linear(key, in_dim, out_dim):
    kw, kb = jax.random.split(key)
    bound = 1.0 / jnp.sqrt(float(in_dim))
    w = jax.random.uniform(kw, (in_dim, out_dim), jnp.float32, -bound, bound)
    b = jax.random.uniform(kb, (out_dim,), jnp.float32, -bound, bound)
    return w, b


def build_params(key, input_dim, encoder_hidden_dims, decoder_hidden_dims):
    enc_flat, dec_flat = [], []

    prev = input_dim
    for dim in encoder_hidden_dims:
        key, sub = jax.random.split(key)
        w, b = _init_linear(sub, prev, dim)
        enc_flat += [w, b]
        prev = dim

    for i in range(len(decoder_hidden_dims) - 1):
        key, sub = jax.random.split(key)
        w, b = _init_linear(sub, decoder_hidden_dims[i], decoder_hidden_dims[i + 1])
        dec_flat += [w, b]
    key, sub = jax.random.split(key)
    w, b = _init_linear(sub, decoder_hidden_dims[-1], input_dim)
    dec_flat += [w, b]

    return tuple(enc_flat), tuple(dec_flat)


# Pure-JAX reference with the SAME dtype policy (bf16 matmul operands, f32 acc).
def reference_forward(x, enc_flat, dec_flat):
    n_enc = len(enc_flat) // 2
    n_dec = len(dec_flat) // 2
    h = x.astype(jnp.bfloat16)
    a = None
    for i in range(n_enc):
        w = enc_flat[2 * i].astype(jnp.bfloat16)
        b = enc_flat[2 * i + 1].reshape(1, -1).astype(jnp.float32)
        a = jnp.maximum(jnp.dot(h, w, preferred_element_type=jnp.float32) + b, 0.0)
        h = a.astype(jnp.bfloat16)
    encoded = a
    for i in range(n_dec):
        w = dec_flat[2 * i].astype(jnp.bfloat16)
        b = dec_flat[2 * i + 1].reshape(1, -1).astype(jnp.float32)
        a = jnp.dot(h, w, preferred_element_type=jnp.float32) + b
        if i < n_dec - 1:
            a = jnp.maximum(a, 0.0)
        h = a.astype(jnp.bfloat16)
    return encoded, a


if __name__ == "__main__":
    # Small shapes consistent with the module's forward.
    input_dim = 32
    encoder_hidden_dims = [64, 16]
    decoder_hidden_dims = [16, 64]   # decoder_hidden_dims[0] == encoder output dim
    batch = 8

    key = jax.random.PRNGKey(0)
    key, xkey = jax.random.split(key)
    x = jax.random.normal(xkey, (batch, input_dim), jnp.float32)

    enc_flat, dec_flat = build_params(
        key, input_dim, encoder_hidden_dims, decoder_hidden_dims
    )

    encoded, decoded = autoencoder_forward(x, enc_flat, dec_flat)
    encoded, decoded = jax.block_until_ready((encoded, decoded))

    enc_ref, dec_ref = reference_forward(x, enc_flat, dec_flat)

    assert encoded.shape == (batch, encoder_hidden_dims[-1])
    assert decoded.shape == (batch, input_dim)
    assert jnp.allclose(encoded, enc_ref, atol=1e-3, rtol=1e-3), "encoded mismatch"
    assert jnp.allclose(decoded, dec_ref, atol=1e-3, rtol=1e-3), "decoded mismatch"

    print("KERNEL_OK")
</pallas_src>

<mosaic_0001>
module attributes {stable_mosaic.version = 11 : i64} {
  func.func @kernel(%arg0: i32, %arg1: memref<8x128xbf16, #tpu.memory_space<vmem>>, %arg2: memref<128x128xbf16, #tpu.memory_space<vmem>>, %arg3: memref<1x128xf32, #tpu.memory_space<vmem>>, %arg4: memref<128x128xbf16, #tpu.memory_space<vmem>>, %arg5: memref<1x128xf32, #tpu.memory_space<vmem>>, %arg6: memref<128x128xbf16, #tpu.memory_space<vmem>>, %arg7: memref<1x128xf32, #tpu.memory_space<vmem>>, %arg8: memref<128x128xbf16, #tpu.memory_space<vmem>>, %arg9: memref<1x128xf32, #tpu.memory_space<vmem>>, %arg10: memref<8x128xf32, #tpu.memory_space<vmem>>, %arg11: memref<8x128xf32, #tpu.memory_space<vmem>>, %arg12: memref<8x128xf32, #tpu.memory_space<vmem>>) attributes {dimension_semantics = [#tpu.dimension_semantics<parallel>], iteration_bounds = array<i64: 1>, scalar_prefetch = 0 : i64, scratch_operands = 1 : i64, tpu.core_type = #tpu.core_type<tc>, window_params = [{transform_indices = @transform_0, window_bounds = array<i64: 8, 128>}, {pipeline_mode = #tpu.pipeline_mode<synchronous>, transform_indices = @transform_1, window_bounds = array<i64: 128, 128>}, {pipeline_mode = #tpu.pipeline_mode<synchronous>, transform_indices = @transform_2, window_bounds = array<i64: 1, 128>}, {pipeline_mode = #tpu.pipeline_mode<synchronous>, transform_indices = @transform_3, window_bounds = array<i64: 128, 128>}, {pipeline_mode = #tpu.pipeline_mode<synchronous>, transform_indices = @transform_4, window_bounds = array<i64: 1, 128>}, {pipeline_mode = #tpu.pipeline_mode<synchronous>, transform_indices = @transform_5, window_bounds = array<i64: 128, 128>}, {pipeline_mode = #tpu.pipeline_mode<synchronous>, transform_indices = @transform_6, window_bounds = array<i64: 1, 128>}, {pipeline_mode = #tpu.pipeline_mode<synchronous>, transform_indices = @transform_7, window_bounds = array<i64: 128, 128>}, {pipeline_mode = #tpu.pipeline_mode<synchronous>, transform_indices = @transform_8, window_bounds = array<i64: 1, 128>}, {transform_indices = @transform_9, window_bounds = array<i64: 8, 128>}, {transform_indices = @transform_10, window_bounds = array<i64: 8, 128>}]} {
    %c0 = arith.constant 0 : index
    %c0_0 = arith.constant 0 : index
    %0 = vector.load %arg1[%c0, %c0_0] : memref<8x128xbf16, #tpu.memory_space<vmem>>, vector<8x128xbf16>
    %c0_1 = arith.constant 0 : index
    %c0_2 = arith.constant 0 : index
    %1 = vector.load %arg2[%c0_1, %c0_2] : memref<128x128xbf16, #tpu.memory_space<vmem>>, vector<128x128xbf16>
    %c0_3 = arith.constant 0 : index
    %c0_4 = arith.constant 0 : index
    %2 = vector.load %arg3[%c0_3, %c0_4] : memref<1x128xf32, #tpu.memory_space<vmem>>, vector<1x128xf32>
    %cst = arith.constant dense<0.000000e+00> : vector<8x128xf32>
    %3 = tpu.matmul %0, %1, %cst {dimension_numbers = #tpu.dot_dimension_numbers<[1], [0], [0], [1], [0, 0, 1, 1], [], []>} : vector<8x128xbf16>, vector<128x128xbf16>, vector<8x128xf32> -> vector<8x128xf32>
    %4 = vector.broadcast %2 : vector<1x128xf32> to vector<8x128xf32>
    %5 = arith.addf %3, %4 : vector<8x128xf32>
    %cst_5 = arith.constant 0.000000e+00 : f32
    %6 = vector.broadcast %cst_5 : f32 to vector<8x128xf32>
    %7 = arith.maximumf %5, %6 : vector<8x128xf32>
    %c0_6 = arith.constant 0 : index
    %c0_7 = arith.constant 0 : index
    %8 = vector.load %arg12[%c0_6, %c0_7] : memref<8x128xf32, #tpu.memory_space<vmem>>, vector<8x128xf32>
    tpu.vector_store %arg12[%c0_6, %c0_7], %7 {strides = array<i32>} : memref<8x128xf32, #tpu.memory_space<vmem>>, vector<8x128xf32>,
    %c0_8 = arith.constant 0 : index
    %c0_9 = arith.constant 0 : index
    %9 = vector.load %arg12[%c0_8, %c0_9] : memref<8x128xf32, #tpu.memory_space<vmem>>, vector<8x128xf32>
    %10 = arith.truncf %9 : vector<8x128xf32> to vector<8x128xbf16>
    %c0_10 = arith.constant 0 : index
    %c0_11 = arith.constant 0 : index
    %11 = vector.load %arg4[%c0_10, %c0_11] : memref<128x128xbf16, #tpu.memory_space<vmem>>, vector<128x128xbf16>
    %c0_12 = arith.constant 0 : index
    %c0_13 = arith.constant 0 : index
    %12 = vector.load %arg5[%c0_12, %c0_13] : memref<1x128xf32, #tpu.memory_space<vmem>>, vector<1x128xf32>
    %cst_14 = arith.constant dense<0.000000e+00> : vector<8x128xf32>
    %13 = tpu.matmul %10, %11, %cst_14 {dimension_numbers = #tpu.dot_dimension_numbers<[1], [0], [0], [1], [0, 0, 1, 1], [], []>} : vector<8x128xbf16>, vector<128x128xbf16>, vector<8x128xf32> -> vector<8x128xf32>
    %14 = vector.broadcast %12 : vector<1x128xf32> to vector<8x128xf32>
    %15 = arith.addf %13, %14 : vector<8x128xf32>
    %cst_15 = arith.constant 0.000000e+00 : f32
    %16 = vector.broadcast %cst_15 : f32 to vector<8x128xf32>
    %17 = arith.maximumf %15, %16 : vector<8x128xf32>
    %c0_16 = arith.constant 0 : index
    %c0_17 = arith.constant 0 : index
    %18 = vector.load %arg12[%c0_16, %c0_17] : memref<8x128xf32, #tpu.memory_space<vmem>>, vector<8x128xf32>
    tpu.vector_store %arg12[%c0_16, %c0_17], %17 {strides = array<i32>} : memref<8x128xf32, #tpu.memory_space<vmem>>, vector<8x128xf32>,
    %c0_18 = arith.constant 0 : index
    %c0_19 = arith.constant 0 : index
    %19 = vector.load %arg12[%c0_18, %c0_19] : memref<8x128xf32, #tpu.memory_space<vmem>>, vector<8x128xf32>
    %20 = arith.truncf %19 : vector<8x128xf32> to vector<8x128xbf16>
    %c0_20 = arith.constant 0 : index
    %c0_21 = arith.constant 0 : index
    %21 = vector.load %arg12[%c0_20, %c0_21] : memref<8x128xf32, #tpu.memory_space<vmem>>, vector<8x128xf32>
    %c0_22 = arith.constant 0 : index
    %c0_23 = arith.constant 0 : index
    %22 = vector.load %arg10[%c0_22, %c0_23] : memref<8x128xf32, #tpu.memory_space<vmem>>, vector<8x128xf32>
    tpu.vector_store %arg10[%c0_22, %c0_23], %21 {strides = array<i32>} : memref<8x128xf32, #tpu.memory_space<vmem>>, vector<8x128xf32>,
    %c0_24 = arith.constant 0 : index
    %c0_25 = arith.constant 0 : index
    %23 = vector.load %arg6[%c0_24, %c0_25] : memref<128x128xbf16, #tpu.memory_space<vmem>>, vector<128x128xbf16>
    %c0_26 = arith.constant 0 : index
    %c0_27 = arith.constant 0 : index
    %24 = vector.load %arg7[%c0_26, %c0_27] : memref<1x128xf32, #tpu.memory_space<vmem>>, vector<1x128xf32>
    %cst_28 = arith.constant dense<0.000000e+00> : vector<8x128xf32>
    %25 = tpu.matmul %20, %23, %cst_28 {dimension_numbers = #tpu.dot_dimension_numbers<[1], [0], [0], [1], [0, 0, 1, 1], [], []>} : vector<8x128xbf16>, vector<128x128xbf16>, vector<8x128xf32> -> vector<8x128xf32>
    %26 = vector.broadcast %24 : vector<1x128xf32> to vector<8x128xf32>
    %27 = arith.addf %25, %26 : vector<8x128xf32>
    %cst_29 = arith.constant 0.000000e+00 : f32
    %28 = vector.broadcast %cst_29 : f32 to vector<8x128xf32>
    %29 = arith.maximumf %27, %28 : vector<8x128xf32>
    %c0_30 = arith.constant 0 : index
    %c0_31 = arith.constant 0 : index
    %30 = vector.load %arg12[%c0_30, %c0_31] : memref<8x128xf32, #tpu.memory_space<vmem>>, vector<8x128xf32>
    tpu.vector_store %arg12[%c0_30, %c0_31], %29 {strides = array<i32>} : memref<8x128xf32, #tpu.memory_space<vmem>>, vector<8x128xf32>,
    %c0_32 = arith.constant 0 : index
    %c0_33 = arith.constant 0 : index
    %31 = vector.load %arg12[%c0_32, %c0_33] : memref<8x128xf32, #tpu.memory_space<vmem>>, vector<8x128xf32>
    %32 = arith.truncf %31 : vector<8x128xf32> to vector<8x128xbf16>
    %c0_34 = arith.constant 0 : index
    %c0_35 = arith.constant 0 : index
    %33 = vector.load %arg8[%c0_34, %c0_35] : memref<128x128xbf16, #tpu.memory_space<vmem>>, vector<128x128xbf16>
    %c0_36 = arith.constant 0 : index
    %c0_37 = arith.constant 0 : index
    %34 = vector.load %arg9[%c0_36, %c0_37] : memref<1x128xf32, #tpu.memory_space<vmem>>, vector<1x128xf32>
    %cst_38 = arith.constant dense<0.000000e+00> : vector<8x128xf32>
    %35 = tpu.matmul %32, %33, %cst_38 {dimension_numbers = #tpu.dot_dimension_numbers<[1], [0], [0], [1], [0, 0, 1, 1], [], []>} : vector<8x128xbf16>, vector<128x128xbf16>, vector<8x128xf32> -> vector<8x128xf32>
    %36 = vector.broadcast %34 : vector<1x128xf32> to vector<8x128xf32>
    %37 = arith.addf %35, %36 : vector<8x128xf32>
    %c0_39 = arith.constant 0 : index
    %c0_40 = arith.constant 0 : index
    %38 = vector.load %arg12[%c0_39, %c0_40] : memref<8x128xf32, #tpu.memory_space<vmem>>, vector<8x128xf32>
    tpu.vector_store %arg12[%c0_39, %c0_40], %37 {strides = array<i32>} : memref<8x128xf32, #tpu.memory_space<vmem>>, vector<8x128xf32>,
    %c0_41 = arith.constant 0 : index
    %c0_42 = arith.constant 0 : index
    %39 = vector.load %arg12[%c0_41, %c0_42] : memref<8x128xf32, #tpu.memory_space<vmem>>, vector<8x128xf32>
    %c0_43 = arith.constant 0 : index
    %c0_44 = arith.constant 0 : index
    %40 = vector.load %arg11[%c0_43, %c0_44] : memref<8x128xf32, #tpu.memory_space<vmem>>, vector<8x128xf32>
    tpu.vector_store %arg11[%c0_43, %c0_44], %39 {strides = array<i32>} : memref<8x128xf32, #tpu.memory_space<vmem>>, vector<8x128xf32>,
    return
  }
  func.func @transform_0(%arg0: i32) -> (i32, i32) {
    %c0_i32 = arith.constant 0 : i32
    %c0_i32_0 = arith.constant 0 : i32
    return %arg0, %c0_i32 : i32, i32
  }
  func.func @transform_1(%arg0: i32) -> (i32, i32) {
    %c0_i32 = arith.constant 0 : i32
    %c0_i32_0 = arith.constant 0 : i32
    %c0_i32_1 = arith.constant 0 : i32
    return %c0_i32, %c0_i32_0 : i32, i32
  }
  func.func @transform_2(%arg0: i32) -> (i32, i32) {
    %c0_i32 = arith.constant 0 : i32
    %c0_i32_0 = arith.constant 0 : i32
    %c0_i32_1 = arith.constant 0 : i32
    return %c0_i32, %c0_i32_0 : i32, i32
  }
  func.func @transform_3(%arg0: i32) -> (i32, i32) {
    %c0_i32 = arith.constant 0 : i32
    %c0_i32_0 = arith.constant 0 : i32
    %c0_i32_1 = arith.constant 0 : i32
    return %c0_i32, %c0_i32_0 : i32, i32
  }
  func.func @transform_4(%arg0: i32) -> (i32, i32) {
    %c0_i32 = arith.constant 0 : i32
    %c0_i32_0 = arith.constant 0 : i32
    %c0_i32_1 = arith.constant 0 : i32
    return %c0_i32, %c0_i32_0 : i32, i32
  }
  func.func @transform_5(%arg0: i32) -> (i32, i32) {
    %c0_i32 = arith.constant 0 : i32
    %c0_i32_0 = arith.constant 0 : i32
    %c0_i32_1 = arith.constant 0 : i32
    return %c0_i32, %c0_i32_0 : i32, i32
  }
  func.func @transform_6(%arg0: i32) -> (i32, i32) {
    %c0_i32 = arith.constant 0 : i32
    %c0_i32_0 = arith.constant 0 : i32
    %c0_i32_1 = arith.constant 0 : i32
    return %c0_i32, %c0_i32_0 : i32, i32
  }
  func.func @transform_7(%arg0: i32) -> (i32, i32) {
    %c0_i32 = arith.constant 0 : i32
    %c0_i32_0 = arith.constant 0 : i32
    %c0_i32_1 = arith.constant 0 : i32
    return %c0_i32, %c0_i32_0 : i32, i32
  }
  func.func @transform_8(%arg0: i32) -> (i32, i32) {
    %c0_i32 = arith.constant 0 : i32
    %c0_i32_0 = arith.constant 0 : i32
    %c0_i32_1 = arith.constant 0 : i32
    return %c0_i32, %c0_i32_0 : i32, i32
  }
  func.func @transform_9(%arg0: i32) -> (i32, i32) {
    %c0_i32 = arith.constant 0 : i32
    %c0_i32_0 = arith.constant 0 : i32
    return %arg0, %c0_i32 : i32, i32
  }
  func.func @transform_10(%arg0: i32) -> (i32, i32) {
    %c0_i32 = arith.constant 0 : i32
    %c0_i32_0 = arith.constant 0 : i32
    return %arg0, %c0_i32 : i32, i32
  }
}

</mosaic_0001>

<llo_original>
// kernel: autoencoder_forward.1
$region0: #{autoencoder_forward.1}
  #allocation0 [shape = 'u32[]', space=smem, size = 0x4, offset = 0x4, fixed_abs, tag = 'smem constant byte address 0x4 - core index']
  #allocation1 [shape = 'u32[144,128]{1,0:T(1,128)}', space=vmem, size = 0x12000, scoped, tag = 'internal scratch']
  #allocation2 [shape = 'f32[8,128]{1,0:T(8,128)}', space=vmem, size = 0x1000, scoped, tag = 'scratch operand']
  %s0 = inlined_call_operand.vmem [shape: bf16[8,128], index: 0, kind: input, shape index: {}]
  %s1 = inlined_call_operand.vmem [shape: bf16[128,128], index: 1, kind: input, shape index: {}]
  %s2 = inlined_call_operand.vmem [shape: f32[1,128], index: 2, kind: input, shape index: {}]
  %s3 = inlined_call_operand.vmem [shape: bf16[128,128], index: 3, kind: input, shape index: {}]
  %s4 = inlined_call_operand.vmem [shape: f32[1,128], index: 4, kind: input, shape index: {}]
  %s5 = inlined_call_operand.vmem [shape: bf16[128,128], index: 5, kind: input, shape index: {}]
  %s6 = inlined_call_operand.vmem [shape: f32[1,128], index: 6, kind: input, shape index: {}]
  %s7 = inlined_call_operand.vmem [shape: bf16[128,128], index: 7, kind: input, shape index: {}]
  %s8 = inlined_call_operand.vmem [shape: f32[1,128], index: 8, kind: input, shape index: {}]
  %s9 = inlined_call_operand.hbm [shape: f32[8,128], index: 9, kind: output, shape index: {0}]
  %s10 = inlined_call_operand.hbm [shape: f32[8,128], index: 10, kind: output, shape index: {1}]
  %11 = xla_tuple %s9, %s10
  %s12 = sld [smem:[#allocation0]]
  $region54: #{autoencoder_forward.1} parent=0
    _
  %s14 = ssub.s32 1, %s12
  %s15 = scalar_select 0, %s14, %s12
  $region1: #{autoencoder_forward.1} parent=0
    #allocation3 [shape = 'u8[4096]{0}', space=vmem, size = 0x1000, scoped, tag = 'output window, operand 0, single buffered']
    #allocation4 [shape = 's32[1]{0}', space=sflag, size = 0x4, scoped, tag = 'scoped memory for autoencoder_forward.1']
    #allocation5 [shape = 'u8[4096]{0}', space=vmem, size = 0x1000, scoped, tag = 'output window, operand 1, single buffered']
    #allocation6 [shape = 's32[1]{0}', space=sflag, size = 0x4, scoped, tag = 'scoped memory for autoencoder_forward.1']
    %16 = vsyncpa [#allocation4], 0
    %17 = vsyncpa [#allocation6], 0
    // Predicated region
    $region2: #{autoencoder_forward.1} parent=1 // pred_check
      _
    $region3: #{autoencoder_forward.1} parent=1 // pred_check_branch
      %19 = sbr.rel (0) target = $region5
    $region4: #{autoencoder_forward.1} parent=1 // pred_region
      _
    $region5: #{autoencoder_forward.1} parent=1 // pred_fallthru
      _
    // Predicated region
    $region6: #{autoencoder_forward.1} parent=1 // pred_check
      _
    $region7: #{autoencoder_forward.1} parent=1 // pred_check_branch
      %21 = sbr.rel (0) target = $region9
    $region8: #{autoencoder_forward.1} parent=1 // pred_region
      _
    $region9: #{autoencoder_forward.1} parent=1 // pred_fallthru
      _
    // Predicated region
    $region10: #{autoencoder_forward.1} parent=1 // pred_check
      _
    $region11: #{autoencoder_forward.1} parent=1 // pred_check_branch
      %23 = sbr.rel (0) target = $region13
    $region12: #{autoencoder_forward.1} parent=1 // pred_region
      _
    $region13: #{autoencoder_forward.1} parent=1 // pred_fallthru
      _
    // Predicated region
    $region14: #{autoencoder_forward.1} parent=1 // pred_check
      _
    $region15: #{autoencoder_forward.1} parent=1 // pred_check_branch
      %25 = sbr.rel (0) target = $region17
    $region16: #{autoencoder_forward.1} parent=1 // pred_region
      _
    $region17: #{autoencoder_forward.1} parent=1 // pred_fallthru
      _
    // Predicated region
    $region18: #{autoencoder_forward.1} parent=1 // pred_check
      _
    $region19: #{autoencoder_forward.1} parent=1 // pred_check_branch
      %27 = sbr.rel (0) target = $region21
    $region20: #{autoencoder_forward.1} parent=1 // pred_region
      _
    $region21: #{autoencoder_forward.1} parent=1 // pred_fallthru
      _
    // Predicated region
    $region22: #{autoencoder_forward.1} parent=1 // pred_check
      _
    $region23: #{autoencoder_forward.1} parent=1 // pred_check_branch
      %29 = sbr.rel (0) target = $region25
    $region24: #{autoencoder_forward.1} parent=1 // pred_region
      _
    $region25: #{autoencoder_forward.1} parent=1 // pred_fallthru
      _
    // Predicated region
    $region26: #{autoencoder_forward.1} parent=1 // pred_check
      _
    $region27: #{autoencoder_forward.1} parent=1 // pred_check_branch
      %31 = sbr.rel (0) target = $region29
    $region28: #{autoencoder_forward.1} parent=1 // pred_region
      _
    $region29: #{autoencoder_forward.1} parent=1 // pred_fallthru
      _
    // Predicated region
    $region30: #{autoencoder_forward.1} parent=1 // pred_check
      _
    $region31: #{autoencoder_forward.1} parent=1 // pred_check_branch
      %33 = sbr.rel (0) target = $region33
    $region32: #{autoencoder_forward.1} parent=1 // pred_region
      _
    $region33: #{autoencoder_forward.1} parent=1 // pred_fallthru
      _
    // Predicated region
    $region34: #{autoencoder_forward.1} parent=1 // pred_check
      _
    $region35: #{autoencoder_forward.1} parent=1 // pred_check_branch
      %35 = sbr.rel (0) target = $region37
    $region36: #{autoencoder_forward.1} parent=1 // pred_region
      _
    $region37: #{autoencoder_forward.1} parent=1 // pred_fallthru
      _
    %v37 = vld [vmem:[%s0] sm:$0xf]
    %v38 = vld [vmem:[%s1] sm:$0xf]
    %v39 = vld [vmem:[%s1 + $0x4] sm:$0xf]
    %v40 = vld [vmem:[%s1 + $0x8] sm:$0xf]
    %v41 = vld [vmem:[%s1 + $0xc] sm:$0xf]
    %v42 = vld [vmem:[%s1 + $0x10] sm:$0xf]
    %v43 = vld [vmem:[%s1 + $0x14] sm:$0xf]
    %v44 = vld [vmem:[%s1 + $0x18] sm:$0xf]
    %v45 = vld [vmem:[%s1 + $0x1c] sm:$0xf]
    %v46 = vld [vmem:[%s1 + $0x20] sm:$0xf]
    %v47 = vld [vmem:[%s1 + $0x24] sm:$0xf]
    %v48 = vld [vmem:[%s1 + $0x28] sm:$0xf]
    %v49 = vld [vmem:[%s1 + $0x2c] sm:$0xf]
    %v50 = vld [vmem:[%s1 + $0x30] sm:$0xf]
    %v51 = vld [vmem:[%s1 + $0x34] sm:$0xf]
    %v52 = vld [vmem:[%s1 + $0x38] sm:$0xf]
    %v53 = vld [vmem:[%s1 + $0x3c] sm:$0xf]
    %v54 = vld [vmem:[%s2] sm:$0x1]
    %v56 = vlaneseq
    %v57 = vshrl.u32 %v56, 7
    %v58 = vsub.s32 0, %v57
    %v59 = vrot.slane %v54, %v58
    %v77 = vunpack.c.l.b16 %v38
    %v78 = vunpack.c.l.b16 %v39
    %v79 = vunpack.c.l.b16 %v40
    %v80 = vunpack.c.l.b16 %v41
    %v81 = vunpack.c.l.b16 %v42
    %v82 = vunpack.c.l.b16 %v43
    %v83 = vunpack.c.l.b16 %v44
    %v84 = vunpack.c.l.b16 %v45
    %v85 = vunpack.c.l.b16 %v46
    %v86 = vunpack.c.l.b16 %v47
    %v87 = vunpack.c.l.b16 %v48
    %v88 = vunpack.c.l.b16 %v49
    %v89 = vunpack.c.l.b16 %v50
    %v90 = vunpack.c.l.b16 %v51
    %v91 = vunpack.c.l.b16 %v52
    %v92 = vunpack.c.l.b16 %v53
    %v93 = vpack.c.b16 %v78, %v77
    %v94 = vpack.c.b16 %v80, %v79
    %v95 = vpack.c.b16 %v82, %v81
    %v96 = vpack.c.b16 %v84, %v83
    %v97 = vpack.c.b16 %v86, %v85
    %v98 = vpack.c.b16 %v88, %v87
    %v99 = vpack.c.b16 %v90, %v89
    %v100 = vpack.c.b16 %v92, %v91
    %109 = vmatprep.subr.bf16.mxu0 0
    %110 = vmatpush1.bf16.msra.mxu0 %v93
    %111 = vmatprep.subr.bf16.mxu0 0
    %112 = vmatpush1.bf16.msra.mxu0 %v94
    %113 = vmatprep.subr.bf16.mxu0 0
    %114 = vmatpush1.bf16.msra.mxu0 %v95
    %115 = vmatprep.subr.bf16.mxu0 0
    %116 = vmatpush1.bf16.msra.mxu0 %v96
    %117 = vmatprep.subr.bf16.mxu0 0
    %118 = vmatpush1.bf16.msra.mxu0 %v97
    %119 = vmatprep.subr.bf16.mxu0 0
    %120 = vmatpush1.bf16.msra.mxu0 %v98
    %121 = vmatprep.subr.bf16.mxu0 0
    %122 = vmatpush1.bf16.msra.mxu0 %v99
    %123 = vmatprep.subr.bf16.mxu0 0
    %124 = vmatpush1.bf16.msra.mxu0 %v100
    %125 = vmatprep.subr.bf16.mxu0 0
    %126 = vmatpush1.bf16.msra.mxu0 0
    %127 = vmatprep.subr.bf16.mxu0 0
    %128 = vmatpush1.bf16.msra.mxu0 0
    %129 = vmatprep.subr.bf16.mxu0 0
    %130 = vmatpush1.bf16.msra.mxu0 0
    %131 = vmatprep.subr.bf16.mxu0 0
    %132 = vmatpush1.bf16.msra.mxu0 0
    %133 = vmatprep.subr.bf16.mxu0 0
    %134 = vmatpush1.bf16.msra.mxu0 0
    %135 = vmatprep.subr.bf16.mxu0 0
    %136 = vmatpush1.bf16.msra.mxu0 0
    %137 = vmatprep.subr.bf16.mxu0 0
    %138 = vmatpush1.bf16.msra.mxu0 0
    %139 = vmatprep.subr.bf16.mxu0 0
    %140 = vmatpush1.bf16.msra.mxu0 0
    %141 = vmatprep.mubr.bf16.mxu0 0
    %142 = vmatmul.mubr.bf16.gmra.mrb[0].mxu0 %v37
    %v143 = vpop.f32.mrb[0].mxu0
    %v144 = vadd.f32 %v59, %v143
    %v145 = vpop.f32.mrb[0].mxu0
    %v146 = vpop.f32.mrb[0].mxu0
    %v147 = vpop.f32.mrb[0].mxu0
    %148 = vdwg.mxu0
    %v149 = vmax.f32 %v144, 0.0
    %150 = vst [vmem:[#allocation2] sm:$0xff] %v149
    %v151 = vld [vmem:[#allocation2] sm:$0xff]
    %v152 = vpack.c.bf16 %v151, %v151
    %v153 = vld [vmem:[%s3] sm:$0xf]
    %v154 = vld [vmem:[%s3 + $0x4] sm:$0xf]
    %v155 = vld [vmem:[%s3 + $0x8] sm:$0xf]
    %v156 = vld [vmem:[%s3 + $0xc] sm:$0xf]
    %v157 = vld [vmem:[%s3 + $0x10] sm:$0xf]
    %v158 = vld [vmem:[%s3 + $0x14] sm:$0xf]
    %v159 = vld [vmem:[%s3 + $0x18] sm:$0xf]
    %v160 = vld [vmem:[%s3 + $0x1c] sm:$0xf]
    %v161 = vld [vmem:[%s3 + $0x20] sm:$0xf]
    %v162 = vld [vmem:[%s3 + $0x24] sm:$0xf]
    %v163 = vld [vmem:[%s3 + $0x28] sm:$0xf]
    %v164 = vld [vmem:[%s3 + $0x2c] sm:$0xf]
    %v165 = vld [vmem:[%s3 + $0x30] sm:$0xf]
    %v166 = vld [vmem:[%s3 + $0x34] sm:$0xf]
    %v167 = vld [vmem:[%s3 + $0x38] sm:$0xf]
    %v168 = vld [vmem:[%s3 + $0x3c] sm:$0xf]
    %v169 = vld [vmem:[%s4] sm:$0x1]
    %v171 = vlaneseq
    %v172 = vshrl.u32 %v171, 7
    %v173 = vsub.s32 0, %v172
    %v174 = vrot.slane %v169, %v173
    %v192 = vunpack.c.l.b16 %v153
    %v193 = vunpack.c.l.b16 %v154
    %v194 = vunpack.c.l.b16 %v155
    %v195 = vunpack.c.l.b16 %v156
    %v196 = vunpack.c.l.b16 %v157
    %v197 = vunpack.c.l.b16 %v158
    %v198 = vunpack.c.l.b16 %v159
    %v199 = vunpack.c.l.b16 %v160
    %v200 = vunpack.c.l.b16 %v161
    %v201 = vunpack.c.l.b16 %v162
    %v202 = vunpack.c.l.b16 %v163
    %v203 = vunpack.c.l.b16 %v164
    %v204 = vunpack.c.l.b16 %v165
    %v205 = vunpack.c.l.b16 %v166
    %v206 = vunpack.c.l.b16 %v167
    %v207 = vunpack.c.l.b16 %v168
    %v208 = vpack.c.b16 %v193, %v192
    %v209 = vpack.c.b16 %v195, %v194
    %v210 = vpack.c.b16 %v197, %v196
    %v211 = vpack.c.b16 %v199, %v198
    %v212 = vpack.c.b16 %v201, %v200
    %v213 = vpack.c.b16 %v203, %v202
    %v214 = vpack.c.b16 %v205, %v204
    %v215 = vpack.c.b16 %v207, %v206
    %224 = vmatprep.subr.bf16.mxu0 0
    %225 = vmatpush1.bf16.msra.mxu0 %v208
    %226 = vmatprep.subr.bf16.mxu0 0
    %227 = vmatpush1.bf16.msra.mxu0 %v209
    %228 = vmatprep.subr.bf16.mxu0 0
    %229 = vmatpush1.bf16.msra.mxu0 %v210
    %230 = vmatprep.subr.bf16.mxu0 0
    %231 = vmatpush1.bf16.msra.mxu0 %v211
    %232 = vmatprep.subr.bf16.mxu0 0
    %233 = vmatpush1.bf16.msra.mxu0 %v212
    %234 = vmatprep.subr.bf16.mxu0 0
    %235 = vmatpush1.bf16.msra.mxu0 %v213
    %236 = vmatprep.subr.bf16.mxu0 0
    %237 = vmatpush1.bf16.msra.mxu0 %v214
    %238 = vmatprep.subr.bf16.mxu0 0
    %239 = vmatpush1.bf16.msra.mxu0 %v215
    %240 = vmatprep.subr.bf16.mxu0 0
    %241 = vmatpush1.bf16.msra.mxu0 0
    %242 = vmatprep.subr.bf16.mxu0 0
    %243 = vmatpush1.bf16.msra.mxu0 0
    %244 = vmatprep.subr.bf16.mxu0 0
    %245 = vmatpush1.bf16.msra.mxu0 0
    %246 = vmatprep.subr.bf16.mxu0 0
    %247 = vmatpush1.bf16.msra.mxu0 0
    %248 = vmatprep.subr.bf16.mxu0 0
    %249 = vmatpush1.bf16.msra.mxu0 0
    %250 = vmatprep.subr.bf16.mxu0 0
    %251 = vmatpush1.bf16.msra.mxu0 0
    %252 = vmatprep.subr.bf16.mxu0 0
    %253 = vmatpush1.bf16.msra.mxu0 0
    %254 = vmatprep.subr.bf16.mxu0 0
    %255 = vmatpush1.bf16.msra.mxu0 0
    %256 = vmatprep.mubr.bf16.mxu0 0
    %257 = vmatmul.mubr.bf16.gmra.mrb[0].mxu0 %v152
    %v258 = vpop.f32.mrb[0].mxu0
    %v259 = vadd.f32 %v174, %v258
    %v260 = vpop.f32.mrb[0].mxu0
    %v261 = vpop.f32.mrb[0].mxu0
    %v262 = vpop.f32.mrb[0].mxu0
    %263 = vdwg.mxu0
    %v264 = vmax.f32 %v259, 0.0
    %265 = vst [vmem:[#allocation2] sm:$0xff] %v264
    %v266 = vld [vmem:[#allocation2] sm:$0xff]
    %v267 = vpack.c.bf16 %v266, %v266
    %268 = vst [vmem:[#allocation3] sm:$0xff] %v266
    %v269 = vld [vmem:[%s5] sm:$0xf]
    %v270 = vld [vmem:[%s5 + $0x4] sm:$0xf]
    %v271 = vld [vmem:[%s5 + $0x8] sm:$0xf]
    %v272 = vld [vmem:[%s5 + $0xc] sm:$0xf]
    %v273 = vld [vmem:[%s5 + $0x10] sm:$0xf]
    %v274 = vld [vmem:[%s5 + $0x14] sm:$0xf]
    %v275 = vld [vmem:[%s5 + $0x18] sm:$0xf]
    %v276 = vld [vmem:[%s5 + $0x1c] sm:$0xf]
    %v277 = vld [vmem:[%s5 + $0x20] sm:$0xf]
    %v278 = vld [vmem:[%s5 + $0x24] sm:$0xf]
    %v279 = vld [vmem:[%s5 + $0x28] sm:$0xf]
    %v280 = vld [vmem:[%s5 + $0x2c] sm:$0xf]
    %v281 = vld [vmem:[%s5 + $0x30] sm:$0xf]
    %v282 = vld [vmem:[%s5 + $0x34] sm:$0xf]
    %v283 = vld [vmem:[%s5 + $0x38] sm:$0xf]
    %v284 = vld [vmem:[%s5 + $0x3c] sm:$0xf]
    %v285 = vld [vmem:[%s6] sm:$0x1]
    %v287 = vlaneseq
    %v288 = vshrl.u32 %v287, 7
    %v289 = vsub.s32 0, %v288
    %v290 = vrot.slane %v285, %v289
    %v308 = vunpack.c.l.b16 %v269
    %v309 = vunpack.c.l.b16 %v270
    %v310 = vunpack.c.l.b16 %v271
    %v311 = vunpack.c.l.b16 %v272
    %v312 = vunpack.c.l.b16 %v273
    %v313 = vunpack.c.l.b16 %v274
    %v314 = vunpack.c.l.b16 %v275
    %v315 = vunpack.c.l.b16 %v276
    %v316 = vunpack.c.l.b16 %v277
    %v317 = vunpack.c.l.b16 %v278
    %v318 = vunpack.c.l.b16 %v279
    %v319 = vunpack.c.l.b16 %v280
    %v320 = vunpack.c.l.b16 %v281
    %v321 = vunpack.c.l.b16 %v282
    %v322 = vunpack.c.l.b16 %v283
    %v323 = vunpack.c.l.b16 %v284
    %v324 = vpack.c.b16 %v309, %v308
    %v325 = vpack.c.b16 %v311, %v310
    %v326 = vpack.c.b16 %v313, %v312
    %v327 = vpack.c.b16 %v315, %v314
    %v328 = vpack.c.b16 %v317, %v316
    %v329 = vpack.c.b16 %v319, %v318
    %v330 = vpack.c.b16 %v321, %v320
    %v331 = vpack.c.b16 %v323, %v322
    %340 = vmatprep.subr.bf16.mxu0 0
    %341 = vmatpush1.bf16.msra.mxu0 %v324
    %342 = vmatprep.subr.bf16.mxu0 0
    %343 = vmatpush1.bf16.msra.mxu0 %v325
    %344 = vmatprep.subr.bf16.mxu0 0
    %345 = vmatpush1.bf16.msra.mxu0 %v326
    %346 = vmatprep.subr.bf16.mxu0 0
    %347 = vmatpush1.bf16.msra.mxu0 %v327
    %348 = vmatprep.subr.bf16.mxu0 0
    %349 = vmatpush1.bf16.msra.mxu0 %v328
    %350 = vmatprep.subr.bf16.mxu0 0
    %351 = vmatpush1.bf16.msra.mxu0 %v329
    %352 = vmatprep.subr.bf16.mxu0 0
    %353 = vmatpush1.bf16.msra.mxu0 %v330
    %354 = vmatprep.subr.bf16.mxu0 0
    %355 = vmatpush1.bf16.msra.mxu0 %v331
    %356 = vmatprep.subr.bf16.mxu0 0
    %357 = vmatpush1.bf16.msra.mxu0 0
    %358 = vmatprep.subr.bf16.mxu0 0
    %359 = vmatpush1.bf16.msra.mxu0 0
    %360 = vmatprep.subr.bf16.mxu0 0
    %361 = vmatpush1.bf16.msra.mxu0 0
    %362 = vmatprep.subr.bf16.mxu0 0
    %363 = vmatpush1.bf16.msra.mxu0 0
    %364 = vmatprep.subr.bf16.mxu0 0
    %365 = vmatpush1.bf16.msra.mxu0 0
    %366 = vmatprep.subr.bf16.mxu0 0
    %367 = vmatpush1.bf16.msra.mxu0 0
    %368 = vmatprep.subr.bf16.mxu0 0
    %369 = vmatpush1.bf16.msra.mxu0 0
    %370 = vmatprep.subr.bf16.mxu0 0
    %371 = vmatpush1.bf16.msra.mxu0 0
    %372 = vmatprep.mubr.bf16.mxu0 0
    %373 = vmatmul.mubr.bf16.gmra.mrb[0].mxu0 %v267
    %v374 = vpop.f32.mrb[0].mxu0
    %v375 = vadd.f32 %v290, %v374
    %v376 = vpop.f32.mrb[0].mxu0
    %v377 = vpop.f32.mrb[0].mxu0
    %v378 = vpop.f32.mrb[0].mxu0
    %379 = vdwg.mxu0
    %v380 = vmax.f32 %v375, 0.0
    %381 = vst [vmem:[#allocation2] sm:$0xff] %v380
    %v382 = vld [vmem:[#allocation2] sm:$0xff]
    %v383 = vpack.c.bf16 %v382, %v382
    %v384 = vld [vmem:[%s7] sm:$0xf]
    %v385 = vld [vmem:[%s7 + $0x4] sm:$0xf]
    %v386 = vld [vmem:[%s7 + $0x8] sm:$0xf]
    %v387 = vld [vmem:[%s7 + $0xc] sm:$0xf]
    %v388 = vld [vmem:[%s7 + $0x10] sm:$0xf]
    %v389 = vld [vmem:[%s7 + $0x14] sm:$0xf]
    %v390 = vld [vmem:[%s7 + $0x18] sm:$0xf]
    %v391 = vld [vmem:[%s7 + $0x1c] sm:$0xf]
    %v392 = vld [vmem:[%s7 + $0x20] sm:$0xf]
    %v393 = vld [vmem:[%s7 + $0x24] sm:$0xf]
    %v394 = vld [vmem:[%s7 + $0x28] sm:$0xf]
    %v395 = vld [vmem:[%s7 + $0x2c] sm:$0xf]
    %v396 = vld [vmem:[%s7 + $0x30] sm:$0xf]
    %v397 = vld [vmem:[%s7 + $0x34] sm:$0xf]
    %v398 = vld [vmem:[%s7 + $0x38] sm:$0xf]
    %v399 = vld [vmem:[%s7 + $0x3c] sm:$0xf]
    %v400 = vld [vmem:[%s8] sm:$0x1]
    %v402 = vlaneseq
    %v403 = vshrl.u32 %v402, 7
    %v404 = vsub.s32 0, %v403
    %v405 = vrot.slane %v400, %v404
    %v423 = vunpack.c.l.b16 %v384
    %v424 = vunpack.c.l.b16 %v385
    %v425 = vunpack.c.l.b16 %v386
    %v426 = vunpack.c.l.b16 %v387
    %v427 = vunpack.c.l.b16 %v388
    %v428 = vunpack.c.l.b16 %v389
    %v429 = vunpack.c.l.b16 %v390
    %v430 = vunpack.c.l.b16 %v391
    %v431 = vunpack.c.l.b16 %v392
    %v432 = vunpack.c.l.b16 %v393
    %v433 = vunpack.c.l.b16 %v394
    %v434 = vunpack.c.l.b16 %v395
    %v435 = vunpack.c.l.b16 %v396
    %v436 = vunpack.c.l.b16 %v397
    %v437 = vunpack.c.l.b16 %v398
    %v438 = vunpack.c.l.b16 %v399
    %v439 = vpack.c.b16 %v424, %v423
    %v440 = vpack.c.b16 %v426, %v425
    %v441 = vpack.c.b16 %v428, %v427
    %v442 = vpack.c.b16 %v430, %v429
    %v443 = vpack.c.b16 %v432, %v431
    %v444 = vpack.c.b16 %v434, %v433
    %v445 = vpack.c.b16 %v436, %v435
    %v446 = vpack.c.b16 %v438, %v437
    %455 = vmatprep.subr.bf16.mxu0 0
    %456 = vmatpush1.bf16.msra.mxu0 %v439
    %457 = vmatprep.subr.bf16.mxu0 0
    %458 = vmatpush1.bf16.msra.mxu0 %v440
    %459 = vmatprep.subr.bf16.mxu0 0
    %460 = vmatpush1.bf16.msra.mxu0 %v441
    %461 = vmatprep.subr.bf16.mxu0 0
    %462 = vmatpush1.bf16.msra.mxu0 %v442
    %463 = vmatprep.subr.bf16.mxu0 0
    %464 = vmatpush1.bf16.msra.mxu0 %v443
    %465 = vmatprep.subr.bf16.mxu0 0
    %466 = vmatpush1.bf16.msra.mxu0 %v444
    %467 = vmatprep.subr.bf16.mxu0 0
    %468 = vmatpush1.bf16.msra.mxu0 %v445
    %469 = vmatprep.subr.bf16.mxu0 0
    %470 = vmatpush1.bf16.msra.mxu0 %v446
    %471 = vmatprep.subr.bf16.mxu0 0
    %472 = vmatpush1.bf16.msra.mxu0 0
    %473 = vmatprep.subr.bf16.mxu0 0
    %474 = vmatpush1.bf16.msra.mxu0 0
    %475 = vmatprep.subr.bf16.mxu0 0
    %476 = vmatpush1.bf16.msra.mxu0 0
    %477 = vmatprep.subr.bf16.mxu0 0
    %478 = vmatpush1.bf16.msra.mxu0 0
    %479 = vmatprep.subr.bf16.mxu0 0
    %480 = vmatpush1.bf16.msra.mxu0 0
    %481 = vmatprep.subr.bf16.mxu0 0
    %482 = vmatpush1.bf16.msra.mxu0 0
    %483 = vmatprep.subr.bf16.mxu0 0
    %484 = vmatpush1.bf16.msra.mxu0 0
    %485 = vmatprep.subr.bf16.mxu0 0
    %486 = vmatpush1.bf16.msra.mxu0 0
    %487 = vmatprep.mubr.bf16.mxu0 0
    %488 = vmatmul.mubr.bf16.gmra.mrb[0].mxu0 %v383
    %v489 = vpop.f32.mrb[0].mxu0
    %v490 = vadd.f32 %v405, %v489
    %v491 = vpop.f32.mrb[0].mxu0
    %v492 = vpop.f32.mrb[0].mxu0
    %v493 = vpop.f32.mrb[0].mxu0
    %494 = vdwg.mxu0
    %495 = vst [vmem:[#allocation2] sm:$0xff] %v490
    %v496 = vld [vmem:[#allocation2] sm:$0xff]
    %497 = vst [vmem:[#allocation5] sm:$0xff] %v496
    // Predicated region
    $region38: #{autoencoder_forward.1} parent=1 // pred_check
      _
    $region39: #{autoencoder_forward.1} parent=1 // pred_check_branch
      %499 = sbr.rel (0) target = $region41
    $region40: #{autoencoder_forward.1} parent=1 // pred_region
      %s501 = ssub.s32 128, 128
      %502 = vsyncadd [#allocation4], %s501
      %s504 = sshll.u32 [#allocation3], 4
      %s505 = int_to_ptr.vmem [resolvable:$true] %s504
      %507 = dma.vmem_to_hbm [thread:$0]  %s505, 128, %s9, [#allocation4]
    $region41: #{autoencoder_forward.1} parent=1 // pred_fallthru
      _
    // Predicated region
    $region42: #{autoencoder_forward.1} parent=1 // pred_check
      _
    $region43: #{autoencoder_forward.1} parent=1 // pred_check_branch
      %509 = sbr.rel (0) target = $region45
    $region44: #{autoencoder_forward.1} parent=1 // pred_region
      %s511 = ssub.s32 128, 128
      %512 = vsyncadd [#allocation6], %s511
      %s514 = sshll.u32 [#allocation5], 4
      %s515 = int_to_ptr.vmem [resolvable:$true] %s514
      %517 = dma.vmem_to_hbm [thread:$0]  %s515, 128, %s10, [#allocation6]
    $region45: #{autoencoder_forward.1} parent=1 // pred_fallthru
      _
    // Predicated region
    $region46: #{autoencoder_forward.1} parent=1 // pred_check
      _
    $region47: #{autoencoder_forward.1} parent=1 // pred_check_branch
      %519 = sbr.rel (0) target = $region49
    $region48: #{autoencoder_forward.1} parent=1 // pred_region
      %520 = dma.done [#allocation4], 128
    $region49: #{autoencoder_forward.1} parent=1 // pred_fallthru
      _
    // Predicated region
    $region50: #{autoencoder_forward.1} parent=1 // pred_check
      _
    $region51: #{autoencoder_forward.1} parent=1 // pred_check_branch
      %522 = sbr.rel (0) target = $region53
    $region52: #{autoencoder_forward.1} parent=1 // pred_region
      %523 = dma.done [#allocation6], 128
    $region53: #{autoencoder_forward.1} parent=1 // pred_fallthru
      _
    %524 = vsyncpa [#allocation4], 1
    %525 = vsyncpa [#allocation6], 1

</llo_original>
